<compile_context>
chip_gen: v6e
topology: v6e:2x2x1
jax: 0.10.0
libtpu: 0.0.40
codegen_flags: <defaults>
</compile_context>

<pallas_src>
import functools

import jax
import jax.numpy as jnp
from jax.experimental import pallas as pl
from jax.experimental.pallas import tpu as pltpu


# ------------------------------- helpers -------------------------------------

def _cdiv(a, b):
    return -(-a // b)


def _round_up(a, b):
    return _cdiv(a, b) * b


def _elementwise_loss(y, t, criterion):
    d = t - y
    if criterion == "L1":
        return jnp.abs(d)
    if criterion == "L2":
        return d * d
    if criterion == "SmoothL1":                       # PyTorch default beta=1.0
        ad = jnp.abs(d)
        return jnp.where(ad < 1.0, 0.5 * ad * ad, ad - 0.5)
    if criterion == "MAPE":
        # |d / t| == |d| * (1/|t|): keep the divide on the EUP slot.
        return jnp.abs(d) * pl.reciprocal(jnp.abs(t))
    if criterion == "RPD":
        # |d| / (|t + y| / 2) == 2 * |d| * (1/|t + y|)
        return 2.0 * jnp.abs(d) * pl.reciprocal(jnp.abs(t + y))
    raise NotImplementedError(criterion)


# -------------------------------- kernel -------------------------------------

def _loss_sum_kernel(y_ref, t_ref, out_ref, acc_ref, *,
                     criterion, lanes, nblocks, steps_per_chunk,
                     rows_in_last_block, has_ragged, has_phantom):
    """Grid = (chunk 'parallel', step 'arbitrary').

    y_ref/t_ref : (block_rows, lanes) lane-dense input tiles (contiguous DMA).
    acc_ref     : (8, lanes) f32 running partial sum, resident per chunk.
    out_ref     : (8, lanes) per-chunk partial-sum slab, written once per chunk.
    """
    c = pl.program_id(0)
    s = pl.program_id(1)

    @pl.when(s == 0)
    def _init():
        acc_ref[...] = jnp.zeros_like(acc_ref)

    # no-op cast for f32 inputs; upcast path for bf16 (accumulate in f32)
    y = y_ref[...].astype(jnp.float32)
    t = t_ref[...].astype(jnp.float32)
    e = _elementwise_loss(y, t, criterion)

    def _accumulate(v):
        # (block_rows, lanes) -> (block_rows//8, 8, lanes): tile-aligned split,
        # reduced with pure vreg-vreg adds into the tiny (8, lanes) accumulator.
        acc_ref[...] += jnp.sum(v.reshape(-1, 8, lanes), axis=0)

    if has_ragged or has_phantom:
        gstep = c * steps_per_chunk + s

        # Fast path: every full block skips the mask entirely.
        @pl.when(gstep < nblocks - 1)
        def _fast():
            _accumulate(e)

        # Only the final real block pays for the ragged-tail mask.
        @pl.when(gstep == nblocks - 1)
        def _last():
            if has_ragged:
                rid = jax.lax.broadcasted_iota(jnp.int32, e.shape, 0)
                # true select (NOT e * mask): garbage rows may hold NaN/Inf
                _accumulate(jnp.where(rid < rows_in_last_block, e, 0.0))
            else:
                _accumulate(e)

        # gstep > nblocks - 1: phantom step of the megacore split; its DMA is
        # clamped to the last real block and its result is never accumulated.
    else:
        _accumulate(e)

    @pl.when(s == steps_per_chunk - 1)
    def _finalize():
        out_ref[...] = acc_ref[...]


# -------------------------------- wrapper ------------------------------------

def _vmem_params():
    """Generation-aware VMEM budget + scoped-VMEM limit (bytes)."""
    cap = None
    try:
        cap = int(getattr(pltpu.get_tpu_info(), "vmem_capacity_bytes", 0)) or None
    except Exception:
        cap = None
    if cap is None or cap < (32 << 20) or cap > (512 << 20):
        cap = 64 << 20                       # conservative: v7x per-TC VMEM
    if cap >= (100 << 20):                   # v5e / v6e: 128 MiB physical VMEM
        budget = 20 << 20
    else:                                    # v7x: 64 MiB per TensorCore
        budget = 14 << 20
    limit = min(cap // 2, budget + (12 << 20))
    return budget, limit


def _loss_sum(y_flat, t_flat, criterion):
    """sum(criterion(y, target)) over all elements, computed in Pallas."""
    assert y_flat.shape == t_flat.shape and y_flat.ndim == 1
    n = y_flat.shape[0]
    iy = jnp.dtype(y_flat.dtype).itemsize
    it = jnp.dtype(t_flat.dtype).itemsize
    # sublane packing: 8 rows f32, 16 bf16, 32 int8/fp8
    align = max(8, 32 // min(iy, it))

    # ---- lane-dense 2D layout: flat -> (rows, lanes), lanes a multiple of 128.
    # Pad BOTH tensors with 1.0 so padded elements contribute exactly 0 loss for
    # every criterion (d == 0 and the MAPE/RPD denominators are nonzero).
    n_pad = max(align * 128, _round_up(n, 128))
    if n_pad != n:
        pad = n_pad - n
        y_flat = jnp.pad(y_flat, (0, pad), constant_values=1.0)
        t_flat = jnp.pad(t_flat, (0, pad), constant_values=1.0)

    lanes = 128
    for cand in (1024, 512, 256):
        if n_pad % cand == 0 and n_pad // cand >= align:
            lanes = cand
            break
    rows = n_pad // lanes
    y2 = y_flat.reshape(rows, lanes)
    t2 = t_flat.reshape(rows, lanes)

    # ---- block size: as large as the VMEM budget allows, but keep >= ~8 grid
    # steps so the streaming DMA overlaps the VPU pass even for medium batches.
    budget, vmem_limit = _vmem_params()
    per_row = lanes * (2 * (iy + it) + 4)    # 2x double-buffered inputs + f32 temps
    budget_rows = max(align, (budget // per_row) // align * align)
    overlap_rows = max(align, _round_up(_cdiv(rows, 8), align))
    block_rows = max(align, min(budget_rows, overlap_rows))

    nblocks = _cdiv(rows, block_rows)
    # Unconditional 2-chunk split whenever there is more than one block, so the
    # leading 'parallel' axis can shard across v7x's two TensorCores.
    if nblocks >= 2:
        num_chunks, steps_per_chunk = 2, _cdiv(nblocks, 2)
    else:
        num_chunks, steps_per_chunk = 1, nblocks
    has_phantom = num_chunks * steps_per_chunk > nblocks
    has_ragged = (rows % block_rows) != 0
    rows_in_last_block = rows - (nblocks - 1) * block_rows
    last_block = nblocks - 1

    def in_map(c, s):
        g = c * steps_per_chunk + s
        if has_phantom:
            g = jnp.minimum(g, last_block)   # phantom steps re-read the last block
        return (g, 0)

    kernel = functools.partial(
        _loss_sum_kernel,
        criterion=criterion,
        lanes=lanes,
        nblocks=nblocks,
        steps_per_chunk=steps_per_chunk,
        rows_in_last_block=rows_in_last_block,
        has_ragged=has_ragged,
        has_phantom=has_phantom,
    )

    partials = pl.pallas_call(
        kernel,
        out_shape=jax.ShapeDtypeStruct((num_chunks, 8, lanes), jnp.float32),
        grid_spec=pltpu.PrefetchScalarGridSpec(
            num_scalar_prefetch=0,
            grid=(num_chunks, steps_per_chunk),
            in_specs=[
                pl.BlockSpec((block_rows, lanes), in_map),
                pl.BlockSpec((block_rows, lanes), in_map),
            ],
            # squeezed chunk dim; (8, lanes) block is (8,128)-tileable & lane-dense
            out_specs=pl.BlockSpec((None, 8, lanes), lambda c, s: (c, 0, 0)),
            scratch_shapes=[pltpu.VMEM((8, lanes), jnp.float32)],
        ),
        compiler_params=pltpu.CompilerParams(
            # TODO(synk): on v7x, pltpu.CORE_PARALLEL on the chunk axis would
            # guarantee the cross-TC split; "parallel" is the portable choice.
            dimension_semantics=("parallel", "arbitrary"),
            vmem_limit_bytes=vmem_limit,
        ),
    )(y2, t2)

    # tiny tail reduction in the wrapper: (num_chunks, 8, lanes) f32 slab
    return jnp.sum(partials)


class Predictor:
    """JAX/Pallas port of ltcpred.models.predictor.Predictor."""

    _SUPPORTED = ("L1", "L2", "SmoothL1", "MAPE", "RPD")

    def __init__(self, criterion_cfg=None):
        if criterion_cfg is None or criterion_cfg.get("type") not in self._SUPPORTED:
            raise NotImplementedError
        self.criterion_type = criterion_cfg["type"]
        self.loss_weight = criterion_cfg.get("loss_weight", 1.0)

    def forward(self, x):
        # TODO(synk): forward() is abstract in the reference module (raises).
        raise NotImplementedError

    def compute_loss(self, y, target):
        y = jnp.asarray(y)
        target = jnp.asarray(target)
        if not jnp.issubdtype(y.dtype, jnp.floating):
            y = y.astype(jnp.float32)
        if not jnp.issubdtype(target.dtype, jnp.floating):
            target = target.astype(jnp.float32)
        B = y.shape[0]
        total = _loss_sum(y.reshape(-1), target.reshape(-1), self.criterion_type)
        return total * self.loss_weight / B


# ----------------------- pure-JAX reference check ----------------------------

def _ref_loss(y, t, criterion, loss_weight):
    B = y.shape[0]
    yf = jnp.asarray(y, jnp.float32)
    tf = jnp.asarray(t, jnp.float32)
    d = tf - yf
    if criterion == "L1":
        s = jnp.sum(jnp.abs(d))
    elif criterion == "L2":
        s = jnp.sum(d * d)
    elif criterion == "SmoothL1":
        ad = jnp.abs(d)
        s = jnp.sum(jnp.where(ad < 1.0, 0.5 * ad * ad, ad - 0.5))
    elif criterion == "MAPE":
        s = jnp.sum(jnp.abs(d / tf))
    elif criterion == "RPD":
        s = jnp.sum(jnp.abs(d) / (jnp.abs(tf + yf) * 0.5))
    else:
        raise NotImplementedError(criterion)
    return s * loss_weight / B


if __name__ == "__main__":
    key = jax.random.PRNGKey(0)

    def make_inputs(shape, salt):
        ky, kt = jax.random.split(jax.random.fold_in(key, salt))
        # keep targets away from zero so MAPE / RPD are well defined
        y = jax.random.uniform(ky, shape, jnp.float32, minval=0.5, maxval=2.0)
        t = jax.random.uniform(kt, shape, jnp.float32, minval=0.5, maxval=2.0)
        return y, t

    cases = [
        # (shape, criteria) — small shapes consistent with a latency predictor
        ((8, 1), ("L1", "L2", "SmoothL1", "MAPE", "RPD")),  # scalar targets (D==1)
        ((2, 4, 16, 16), ("L1", "MAPE")),                   # small 4D feature map
        ((64, 257), ("L2", "RPD")),         # padded tail + ragged last block + 2 chunks
        ((260, 256), ("SmoothL1", "MAPE")),  # odd block count -> phantom megacore step
    ]

    all_ok = True
    for idx, (shape, crits) in enumerate(cases):
        y, t = make_inputs(shape, idx)
        for crit in crits:
            model = Predictor({"type": crit, "loss_weight": 1.5})
            out = model.compute_loss(y, t)
            jax.block_until_ready(out)
            ref = _ref_loss(y, t, crit, 1.5)
            if not jnp.allclose(out, ref, rtol=5e-4, atol=1e-3):
                all_ok = False
                print(f"MISMATCH shape={shape} {crit}: kernel={out} ref={ref}")

    if all_ok:
        print("KERNEL_OK")
</pallas_src>

<mosaic_0001>
module attributes {stable_mosaic.version = 11 : i64} {
  func.func @_loss_sum_kernel(%arg0: i32, %arg1: i32, %arg2: memref<8x128xf32, #tpu.memory_space<vmem>>, %arg3: memref<8x128xf32, #tpu.memory_space<vmem>>, %arg4: memref<1x8x128xf32, #tpu.memory_space<vmem>>, %arg5: memref<8x128xf32, #tpu.memory_space<vmem>>) attributes {dimension_semantics = [#tpu.dimension_semantics<parallel>, #tpu.dimension_semantics<arbitrary>], iteration_bounds = array<i64: 1, 1>, scalar_prefetch = 0 : i64, scratch_operands = 1 : i64, tpu.core_type = #tpu.core_type<tc>, window_params = [{transform_indices = @transform_0, window_bounds = array<i64: 8, 128>}, {transform_indices = @transform_1, window_bounds = array<i64: 8, 128>}, {transform_indices = @transform_2, window_bounds = array<i64: 1, 8, 128>}]} {
    %c0_i32 = arith.constant 0 : i32
    %0 = arith.cmpi eq, %arg1, %c0_i32 : i32
    %1 = arith.extui %0 : i1 to i32
    %c0_i32_0 = arith.constant 0 : i32
    %2 = arith.cmpi ne, %1, %c0_i32_0 : i32
    scf.if %2 {
      %cst_10 = arith.constant 0.000000e+00 : f32
      %15 = vector.broadcast %cst_10 : f32 to vector<8x128xf32>
      %c0_11 = arith.constant 0 : index
      %c0_12 = arith.constant 0 : index
      %16 = vector.load %arg5[%c0_11, %c0_12] : memref<8x128xf32, #tpu.memory_space<vmem>>, vector<8x128xf32>
      tpu.vector_store %arg5[%c0_11, %c0_12], %15 {strides = array<i32>} : memref<8x128xf32, #tpu.memory_space<vmem>>, vector<8x128xf32>,
    } else {
    }
    %c0 = arith.constant 0 : index
    %c0_1 = arith.constant 0 : index
    %3 = vector.load %arg2[%c0, %c0_1] : memref<8x128xf32, #tpu.memory_space<vmem>>, vector<8x128xf32>
    %c0_2 = arith.constant 0 : index
    %c0_3 = arith.constant 0 : index
    %4 = vector.load %arg3[%c0_2, %c0_3] : memref<8x128xf32, #tpu.memory_space<vmem>>, vector<8x128xf32>
    %5 = arith.subf %4, %3 : vector<8x128xf32>
    %6 = math.absf %5 : vector<8x128xf32>
    %c0_4 = arith.constant 0 : index
    %c0_5 = arith.constant 0 : index
    %7 = vector.load %arg5[%c0_4, %c0_5] : memref<8x128xf32, #tpu.memory_space<vmem>>, vector<8x128xf32>
    %8 = vector.shape_cast %6 : vector<8x128xf32> to vector<1x8x128xf32>
    %cst = arith.constant dense<0.000000e+00> : vector<8x128xf32>
    %9 = vector.multi_reduction <add>, %8, %cst [0] : vector<1x8x128xf32> to vector<8x128xf32>
    %10 = arith.addf %7, %9 : vector<8x128xf32>
    %c0_6 = arith.constant 0 : index
    %c0_7 = arith.constant 0 : index
    %11 = vector.load %arg5[%c0_6, %c0_7] : memref<8x128xf32, #tpu.memory_space<vmem>>, vector<8x128xf32>
    tpu.vector_store %arg5[%c0_6, %c0_7], %10 {strides = array<i32>} : memref<8x128xf32, #tpu.memory_space<vmem>>, vector<8x128xf32>,
    %c0_i32_8 = arith.constant 0 : i32
    %12 = arith.cmpi eq, %arg1, %c0_i32_8 : i32
    %13 = arith.extui %12 : i1 to i32
    %c0_i32_9 = arith.constant 0 : i32
    %14 = arith.cmpi ne, %13, %c0_i32_9 : i32
    scf.if %14 {
      %c0_10 = arith.constant 0 : index
      %c0_11 = arith.constant 0 : index
      %15 = vector.load %arg5[%c0_10, %c0_11] : memref<8x128xf32, #tpu.memory_space<vmem>>, vector<8x128xf32>
      %c0_12 = arith.constant 0 : index
      %c0_13 = arith.constant 0 : index
      %c0_14 = arith.constant 0 : index
      %16 = vector.load %arg4[%c0_12, %c0_13, %c0_14] : memref<1x8x128xf32, #tpu.memory_space<vmem>>, vector<1x8x128xf32>
      %17 = vector.shape_cast %16 : vector<1x8x128xf32> to vector<8x128xf32>
      %18 = vector.shape_cast %15 : vector<8x128xf32> to vector<1x8x128xf32>
      tpu.vector_store %arg4[%c0_12, %c0_13, %c0_14], %18 {strides = array<i32>} : memref<1x8x128xf32, #tpu.memory_space<vmem>>, vector<1x8x128xf32>,
    } else {
    }
    return
  }
  func.func @transform_0(%arg0: i32, %arg1: i32) -> (i32, i32) {
    %c1_i32 = arith.constant 1 : i32
    %0 = arith.muli %arg0, %c1_i32 : i32
    %1 = arith.addi %0, %arg1 : i32
    %c0_i32 = arith.constant 0 : i32
    %c0_i32_0 = arith.constant 0 : i32
    return %1, %c0_i32 : i32, i32
  }
  func.func @transform_1(%arg0: i32, %arg1: i32) -> (i32, i32) {
    %c1_i32 = arith.constant 1 : i32
    %0 = arith.muli %arg0, %c1_i32 : i32
    %1 = arith.addi %0, %arg1 : i32
    %c0_i32 = arith.constant 0 : i32
    %c0_i32_0 = arith.constant 0 : i32
    return %1, %c0_i32 : i32, i32
  }
  func.func @transform_2(%arg0: i32, %arg1: i32) -> (i32, i32, i32) {
    %c0_i32 = arith.constant 0 : i32
    %c0_i32_0 = arith.constant 0 : i32
    %c0_i32_1 = arith.constant 0 : i32
    return %arg0, %c0_i32, %c0_i32_0 : i32, i32, i32
  }
}

</mosaic_0001>

<llo_original>
// kernel: tpu_custom_call.1
$region0: #{tpu_custom_call.1}
  #allocation0 [shape = 'u32[]', space=smem, size = 0x4, offset = 0x4, fixed_abs, tag = 'smem constant byte address 0x4 - core index']
  #allocation1 [shape = 'u32[144,128]{1,0:T(1,128)}', space=vmem, size = 0x12000, scoped, tag = 'internal scratch']
  #allocation2 [shape = 'f32[8,128]{1,0:T(8,128)}', space=vmem, size = 0x1000, scoped, tag = 'scratch operand']
  %s0 = inlined_call_operand.hbm [shape: f32[8,128], index: 0, kind: input, shape index: {}]
  %s1 = inlined_call_operand.hbm [shape: f32[8,128], index: 1, kind: input, shape index: {}]
  %s2 = inlined_call_operand.hbm [shape: f32[1,8,128], index: 2, kind: output, shape index: {}]
  %s3 = sld [smem:[#allocation0]]
  $region34: #{tpu_custom_call.1} parent=0
    _
  %s5 = ssub.s32 1, %s3
  %s6 = scalar_select 0, %s5, %s3
  $region1: #{tpu_custom_call.1} parent=0
    #allocation3 [shape = 'u8[4096]{0}', space=vmem, size = 0x1000, scoped, tag = 'input window, operand 0, single buffered']
    #allocation4 [shape = 's32[1]{0}', space=sflag, size = 0x4, scoped, tag = 'scoped memory for tpu_custom_call.1']
    #allocation5 [shape = 's32[1]{0}', space=sflag, size = 0x4, scoped, tag = 'scoped memory for tpu_custom_call.1']
    #allocation6 [shape = 'u8[4096]{0}', space=vmem, size = 0x1000, scoped, tag = 'input window, operand 1, single buffered']
    #allocation7 [shape = 's32[1]{0}', space=sflag, size = 0x4, scoped, tag = 'scoped memory for tpu_custom_call.1']
    #allocation8 [shape = 'u8[4096]{0}', space=vmem, size = 0x1000, scoped, tag = 'output window, operand 0, single buffered']
    %7 = vsyncpa [#allocation4], 0
    %8 = vsyncpa [#allocation7], 0
    %9 = vsyncpa [#allocation5], 0
    // Predicated region
    $region2: #{tpu_custom_call.1} parent=1 // pred_check
      _
    $region3: #{tpu_custom_call.1} parent=1 // pred_check_branch
      %11 = sbr.rel (0) target = $region5
    $region4: #{tpu_custom_call.1} parent=1 // pred_region
      %s12 = sadd.s32 0, 0
      %s14 = ssub.s32 128, 128
      %15 = vsyncadd [#allocation4], %s14
      %s16 = smul.addr %s12, 128
      %s17 = scalar_lea.hbm %s0, %s16
      %s19 = sshll.u32 [#allocation3], 4
      %s20 = int_to_ptr.vmem [resolvable:$true] %s19
      %22 = dma.hbm_to_vmem [thread:$0]  %s17, 128, %s20, [#allocation4]
    $region5: #{tpu_custom_call.1} parent=1 // pred_fallthru
      _
    // Predicated region
    $region6: #{tpu_custom_call.1} parent=1 // pred_check
      _
    $region7: #{tpu_custom_call.1} parent=1 // pred_check_branch
      %24 = sbr.rel (0) target = $region9
    $region8: #{tpu_custom_call.1} parent=1 // pred_region
      %s25 = sadd.s32 0, 0
      %s27 = ssub.s32 128, 128
      %28 = vsyncadd [#allocation7], %s27
      %s29 = smul.addr %s25, 128
      %s30 = scalar_lea.hbm %s1, %s29
      %s32 = sshll.u32 [#allocation6], 4
      %s33 = int_to_ptr.vmem [resolvable:$true] %s32
      %35 = dma.hbm_to_vmem [thread:$0]  %s30, 128, %s33, [#allocation7]
    $region9: #{tpu_custom_call.1} parent=1 // pred_fallthru
      _
    // Predicated region
    $region10: #{tpu_custom_call.1} parent=1 // pred_check
      _
    $region11: #{tpu_custom_call.1} parent=1 // pred_check_branch
      %37 = sbr.rel (0) target = $region13
    $region12: #{tpu_custom_call.1} parent=1 // pred_region
      %38 = dma.done [#allocation4], 128
    $region13: #{tpu_custom_call.1} parent=1 // pred_fallthru
      _
    // Predicated region
    $region14: #{tpu_custom_call.1} parent=1 // pred_check
      _
    $region15: #{tpu_custom_call.1} parent=1 // pred_check_branch
      %40 = sbr.rel (0) target = $region17
    $region16: #{tpu_custom_call.1} parent=1 // pred_region
      %41 = dma.done [#allocation7], 128
    $region17: #{tpu_custom_call.1} parent=1 // pred_fallthru
      _
    %s42 = sadd.s32 0, 0
    %s43 = sadd.s32 0, 0
    %p44 = scmp.eq.s32.totalorder 0, 0
    // Predicated region
    $region18: #{tpu_custom_call.1} parent=1 // pred_check
      %p45 = pneg %p44
    $region19: #{tpu_custom_call.1} parent=1 // pred_check_branch
      %47 = sbr.rel (%p45) target = $region21
    $region20: #{tpu_custom_call.1} parent=1 // pred_region
      %48 = vst [vmem:[#allocation2] sm:$0xff] 0.0
    $region21: #{tpu_custom_call.1} parent=1 // pred_fallthru
      _
    %v49 = vld [vmem:[#allocation3] sm:$0xff]
    %v50 = vld [vmem:[#allocation6] sm:$0xff]
    %v51 = vsub.f32 %v50, %v49
    %v52 = vand.u32 2147483647, %v51
    %v53 = vld [vmem:[#allocation2] sm:$0xff]
    %v54 = vadd.f32 %v52, 0.0
    %v55 = vadd.f32 %v53, %v54
    %56 = vst [vmem:[#allocation2] sm:$0xff] %v55
    // Predicated region
    $region22: #{tpu_custom_call.1} parent=1 // pred_check
      %p57 = pneg %p44
    $region23: #{tpu_custom_call.1} parent=1 // pred_check_branch
      %59 = sbr.rel (%p57) target = $region25
    $region24: #{tpu_custom_call.1} parent=1 // pred_region
      %v60 = vld [vmem:[#allocation2] sm:$0xff]
      %61 = vst [vmem:[#allocation8] sm:$0xff] %v60
    $region25: #{tpu_custom_call.1} parent=1 // pred_fallthru
      _
    // Predicated region
    $region26: #{tpu_custom_call.1} parent=1 // pred_check
      _
    $region27: #{tpu_custom_call.1} parent=1 // pred_check_branch
      %63 = sbr.rel (0) target = $region29
    $region28: #{tpu_custom_call.1} parent=1 // pred_region
      %s65 = ssub.s32 128, 128
      %66 = vsyncadd [#allocation5], %s65
      %s68 = sshll.u32 [#allocation8], 4
      %s69 = int_to_ptr.vmem [resolvable:$true] %s68
      %71 = dma.vmem_to_hbm [thread:$0]  %s69, 128, %s2, [#allocation5]
    $region29: #{tpu_custom_call.1} parent=1 // pred_fallthru
      _
    // Predicated region
    $region30: #{tpu_custom_call.1} parent=1 // pred_check
      _
    $region31: #{tpu_custom_call.1} parent=1 // pred_check_branch
      %73 = sbr.rel (0) target = $region33
    $region32: #{tpu_custom_call.1} parent=1 // pred_region
      %74 = dma.done [#allocation5], 128
    $region33: #{tpu_custom_call.1} parent=1 // pred_fallthru
      _
    %75 = vsyncpa [#allocation4], 1
    %76 = vsyncpa [#allocation7], 1
    %77 = vsyncpa [#allocation5], 1

</llo_original>
